<compile_context>
chip_gen: v6e
topology: v6e:2x2x1
jax: 0.10.0
libtpu: 0.0.40
codegen_flags: <defaults>
</compile_context>

<pallas_src>
import functools

import jax
import jax.numpy as jnp
from jax.experimental import pallas as pl
from jax.experimental.pallas import tpu as pltpu

_LANE = 128
_SUBLANE = 8


def _round_up(x, m):
    return ((x + m - 1) // m) * m


# --------------------------------------------------------------------------- #
# Kernel
# --------------------------------------------------------------------------- #
def _deepset_kernel(x_ref,                       # (tb*n, d) f32
                    w1_ref, b1_ref,              # (d, H1p) bf16, (1, H1p) f32
                    w23_ref, b23_ref,            # (H1p, H3p) bf16, (1, H3p) f32
                    w4_ref, b4_ref,              # (H3p, out) bf16, (1, out) f32
                    out_ref,                     # (tb, out) f32
                    *, n):
    tbn, _ = x_ref.shape
    tb = tbn // n

    # phi layer 1 on every set element of this batch tile (M = tb*n rows).
    h = jnp.dot(x_ref[...].astype(jnp.bfloat16), w1_ref[...],
                preferred_element_type=jnp.float32) + b1_ref[...]
    h = jnp.maximum(h, 0.0)                              # f32 elementwise

    # Permutation-invariant aggregation hoisted above all remaining (linear)
    # layers.  'mean' is handled by folding 1/n into W23 in the wrapper, so
    # the kernel always sums.  (n=8 here keeps the reshape sublane-aligned.)
    h_agg = h.reshape(tb, n, -1).sum(axis=1)             # (tb, H1p) f32

    # Folded (phi output layer . rho first layer) + ReLU.
    g = jnp.dot(h_agg.astype(jnp.bfloat16), w23_ref[...],
                preferred_element_type=jnp.float32) + b23_ref[...]
    g = jnp.maximum(g, 0.0)

    # rho output layer: lane width == true out_dim (no pad, no post-slice).
    out_ref[...] = jnp.dot(g.astype(jnp.bfloat16), w4_ref[...],
                           preferred_element_type=jnp.float32) + b4_ref[...]


# --------------------------------------------------------------------------- #
# Wrapper
# --------------------------------------------------------------------------- #
def prepare_kernel_params(params, n, aggr):
    """Pad / fold / cast the Linear parameters once (exact in f32)."""
    w1, b1 = params['w1'], params['b1']
    w2, b2 = params['w2'], params['b2']
    w3, b3 = params['w3'], params['b3']
    w4, b4 = params['w4'], params['b4']

    h1, h3 = w1.shape[1], w3.shape[1]
    h1p, h3p = _round_up(h1, _LANE), _round_up(h3, _LANE)

    # Pad phi_hidden to a lane multiple: padded hidden units are relu(0)=0 and
    # multiply zero rows of W23 -> exact.
    w1p = jnp.pad(w1, ((0, 0), (0, h1p - h1)))
    b1p = jnp.pad(b1, ((0, 0), (0, h1p - h1)))
    w2p = jnp.pad(w2, ((0, h1p - h1), (0, 0)))

    # Fold the two adjacent linear layers (no nonlinearity between them).
    w23 = w2p @ w3                                   # (h1p, h3) f32
    bw3 = b2 @ w3                                    # (1, h3) f32
    if aggr == 'sum':
        b23 = float(n) * bw3 + b3
    else:  # mean: fold 1/n into the folded weight so the kernel always sums.
        w23 = w23 * (1.0 / n)
        b23 = bw3 + b3

    # Pad rho_hidden to a lane multiple (same zero-padding argument, exact).
    w23p = jnp.pad(w23, ((0, 0), (0, h3p - h3)))
    b23p = jnp.pad(b23, ((0, 0), (0, h3p - h3)))
    w4p = jnp.pad(w4, ((0, h3p - h3), (0, 0)))

    # MXU operands in bf16 (cast once); biases stay f32.
    return dict(w1=w1p.astype(jnp.bfloat16), b1=b1p,
                w23=w23p.astype(jnp.bfloat16), b23=b23p,
                w4=w4p.astype(jnp.bfloat16), b4=b4)


def _pick_batch_tile(B, n, d, h1p, h3p, out_dim, vmem_budget_bytes=20 << 20):
    """Largest batch tile whose per-step VMEM footprint fits the budget."""
    per_row = n * d * (2 * 4 + 2)        # x: 2x f32 (double buffer) + bf16 copy
    per_row += n * h1p * 4               # h (f32 intermediate, compiler scratch)
    per_row += (h1p + h3p) * 4           # h_agg, g
    per_row += 2 * out_dim * 4           # output tile (double-buffered)
    tb = int(vmem_budget_bytes // max(per_row, 1))
    tb = min(max(tb, 1), 2048)
    if tb >= B:
        tb = B
        # Keep >= 2 grid steps on big batches so 'parallel' can shard the grid
        # across both v7x TensorCores (v5e/v6e are single-TC: irrelevant there,
        # and we only split when B is large enough that per-step overhead stays
        # amortized).
        if B >= 256:
            tb = min(B, _round_up(pl.cdiv(B, 2), _SUBLANE))
    if tb < B:
        tb = max(_SUBLANE, (tb // _SUBLANE) * _SUBLANE)
    return tb


@functools.partial(jax.jit, static_argnames=('aggr',))
def deepset_forward(x, params, aggr='sum'):
    """DeepSet forward pass.  x: (B, n, d) f32.  Returns (B, output_dim) f32."""
    assert aggr in ('mean', 'sum')
    B, n, d = x.shape

    kp = prepare_kernel_params(params, n, aggr)
    h1p = kp['w1'].shape[1]
    h3p = kp['w4'].shape[0]
    out_dim = kp['w4'].shape[1]

    tb = _pick_batch_tile(B, n, d, h1p, h3p, out_dim)
    grid = (pl.cdiv(B, tb),)   # partial last block handled by Pallas (no x pad)

    # Free row-major leading-dim collapse: the kernel sees a plain 2D x tile.
    x2 = x.reshape(B * n, d)

    const = lambda b: (0, 0)   # weights/biases: same block every step -> VMEM-resident
    out = pl.pallas_call(
        functools.partial(_deepset_kernel, n=n),
        out_shape=jax.ShapeDtypeStruct((B, out_dim), jnp.float32),
        grid=grid,
        in_specs=[
            pl.BlockSpec((tb * n, d), lambda b: (b, 0)),
            pl.BlockSpec(kp['w1'].shape, const), pl.BlockSpec(kp['b1'].shape, const),
            pl.BlockSpec(kp['w23'].shape, const), pl.BlockSpec(kp['b23'].shape, const),
            pl.BlockSpec(kp['w4'].shape, const), pl.BlockSpec(kp['b4'].shape, const),
        ],
        out_specs=pl.BlockSpec((tb, out_dim), lambda b: (b, 0)),
        compiler_params=pltpu.CompilerParams(
            dimension_semantics=("parallel",),
            vmem_limit_bytes=48 << 20),
    )(x2, kp['w1'], kp['b1'], kp['w23'], kp['b23'], kp['w4'], kp['b4'])
    return out


# --------------------------------------------------------------------------- #
# References / test
# --------------------------------------------------------------------------- #
def init_params(key, input_dim, phi_hidden, phi_out_dim, rho_hidden, output_dim):
    """Deterministic synthetic parameters (PyTorch-like uniform fan-in scaling)."""
    ks = jax.random.split(key, 8)

    def lin(kw, kb, fan_in, fan_out):
        bound = 1.0 / jnp.sqrt(fan_in)
        w = jax.random.uniform(kw, (fan_in, fan_out), jnp.float32, -bound, bound)
        b = jax.random.uniform(kb, (1, fan_out), jnp.float32, -bound, bound)
        return w, b

    w1, b1 = lin(ks[0], ks[1], input_dim, phi_hidden)
    w2, b2 = lin(ks[2], ks[3], phi_hidden, phi_out_dim)
    w3, b3 = lin(ks[4], ks[5], phi_out_dim, rho_hidden)
    w4, b4 = lin(ks[6], ks[7], rho_hidden, output_dim)
    return dict(w1=w1, b1=b1, w2=w2, b2=b2, w3=w3, b3=b3, w4=w4, b4=b4)


def deepset_reference(x, params, aggr='sum'):
    """Pure-f32 JAX reference matching the PyTorch module exactly."""
    B, n, d = x.shape
    h = jnp.maximum(x.reshape(-1, d) @ params['w1'] + params['b1'], 0.0)
    phi = (h @ params['w2'] + params['b2']).reshape(B, n, -1)
    agg = phi.mean(axis=1) if aggr == 'mean' else phi.sum(axis=1)
    g = jnp.maximum(agg @ params['w3'] + params['b3'], 0.0)
    return g @ params['w4'] + params['b4']


def deepset_reference_kernel_math(x, params, aggr='sum'):
    """Pure-JAX emulation of the kernel's exact math: aggregation hoisted,
    w2@w3 folded (with the n / 1/n factors), bf16 matmul inputs, f32 accum."""
    B, n, d = x.shape
    bf = jnp.bfloat16
    mm = lambda a, w: jnp.dot(a.astype(bf), w.astype(bf),
                              preferred_element_type=jnp.float32)
    w23 = params['w2'] @ params['w3']
    bw3 = params['b2'] @ params['w3']
    if aggr == 'sum':
        b23 = float(n) * bw3 + params['b3']
    else:
        w23 = w23 * (1.0 / n)
        b23 = bw3 + params['b3']
    h = jnp.maximum(mm(x.reshape(-1, d), params['w1']) + params['b1'], 0.0)
    h_agg = h.reshape(B, n, -1).sum(axis=1)
    g = jnp.maximum(mm(h_agg, w23) + b23, 0.0)
    return mm(g, params['w4']) + params['b4']


if __name__ == "__main__":
    # Small shapes consistent with the module's forward(B, n, d).
    n, d = 8, 32
    phi_hidden, phi_out_dim = 64, 32
    rho_hidden, output_dim = 64, 16

    key = jax.random.PRNGKey(0)
    k_x, k_p, k_x2 = jax.random.split(key, 3)
    params = init_params(k_p, d, phi_hidden, phi_out_dim, rho_hidden, output_dim)

    # Case 1: tiny batch (single grid step).
    B = 2
    x = jax.random.normal(k_x, (B, n, d), jnp.float32)
    for aggr in ('sum', 'mean'):
        out = jax.block_until_ready(deepset_forward(x, params, aggr=aggr))
        assert out.shape == (B, output_dim), out.shape
        ref_exact = deepset_reference_kernel_math(x, params, aggr=aggr)
        assert jnp.allclose(out, ref_exact, atol=2e-3, rtol=2e-3), \
            f"{aggr}: mismatch vs bf16-emulated reference"
        ref_f32 = deepset_reference(x, params, aggr=aggr)
        assert jnp.allclose(out, ref_f32, atol=5e-2, rtol=5e-2), \
            f"{aggr}: mismatch vs f32 reference"

    # Case 2: larger batch exercising the multi-step grid + partial last block
    # (B not a multiple of the batch tile, no wrapper-side padding of x).
    B2 = 300
    x2 = jax.random.normal(k_x2, (B2, n, d), jnp.float32)
    out2 = jax.block_until_ready(deepset_forward(x2, params, aggr='sum'))
    assert out2.shape == (B2, output_dim), out2.shape
    ref2 = deepset_reference_kernel_math(x2, params, aggr='sum')
    assert jnp.allclose(out2, ref2, atol=2e-3, rtol=2e-3), \
        "partial-block path: mismatch vs bf16-emulated reference"

    print("KERNEL_OK")
</pallas_src>

<mosaic_0001>
module attributes {stable_mosaic.version = 11 : i64} {
  func.func @_deepset_kernel(%arg0: i32, %arg1: memref<16x32xf32, #tpu.memory_space<vmem>>, %arg2: memref<32x128xbf16, #tpu.memory_space<vmem>>, %arg3: memref<1x128xf32, #tpu.memory_space<vmem>>, %arg4: memref<128x128xbf16, #tpu.memory_space<vmem>>, %arg5: memref<1x128xf32, #tpu.memory_space<vmem>>, %arg6: memref<128x16xbf16, #tpu.memory_space<vmem>>, %arg7: memref<1x16xf32, #tpu.memory_space<vmem>>, %arg8: memref<2x16xf32, #tpu.memory_space<vmem>>) attributes {dimension_semantics = [#tpu.dimension_semantics<parallel>], iteration_bounds = array<i64: 1>, scalar_prefetch = 0 : i64, scratch_operands = 0 : i64, tpu.core_type = #tpu.core_type<tc>, window_params = [{transform_indices = @transform_0, window_bounds = array<i64: 16, 32>}, {pipeline_mode = #tpu.pipeline_mode<synchronous>, transform_indices = @transform_1, window_bounds = array<i64: 32, 128>}, {pipeline_mode = #tpu.pipeline_mode<synchronous>, transform_indices = @transform_2, window_bounds = array<i64: 1, 128>}, {pipeline_mode = #tpu.pipeline_mode<synchronous>, transform_indices = @transform_3, window_bounds = array<i64: 128, 128>}, {pipeline_mode = #tpu.pipeline_mode<synchronous>, transform_indices = @transform_4, window_bounds = array<i64: 1, 128>}, {pipeline_mode = #tpu.pipeline_mode<synchronous>, transform_indices = @transform_5, window_bounds = array<i64: 128, 16>}, {pipeline_mode = #tpu.pipeline_mode<synchronous>, transform_indices = @transform_6, window_bounds = array<i64: 1, 16>}, {transform_indices = @transform_7, window_bounds = array<i64: 2, 16>}]} {
    %c0 = arith.constant 0 : index
    %c0_0 = arith.constant 0 : index
    %0 = vector.load %arg1[%c0, %c0_0] : memref<16x32xf32, #tpu.memory_space<vmem>>, vector<16x32xf32>
    %1 = arith.truncf %0 : vector<16x32xf32> to vector<16x32xbf16>
    %c0_1 = arith.constant 0 : index
    %c0_2 = arith.constant 0 : index
    %2 = vector.load %arg2[%c0_1, %c0_2] : memref<32x128xbf16, #tpu.memory_space<vmem>>, vector<32x128xbf16>
    %cst = arith.constant dense<0.000000e+00> : vector<16x128xf32>
    %3 = tpu.matmul %1, %2, %cst {dimension_numbers = #tpu.dot_dimension_numbers<[1], [0], [0], [1], [0, 0, 1, 1], [], []>} : vector<16x32xbf16>, vector<32x128xbf16>, vector<16x128xf32> -> vector<16x128xf32>
    %c0_3 = arith.constant 0 : index
    %c0_4 = arith.constant 0 : index
    %4 = vector.load %arg3[%c0_3, %c0_4] : memref<1x128xf32, #tpu.memory_space<vmem>>, vector<1x128xf32>
    %5 = vector.broadcast %4 : vector<1x128xf32> to vector<16x128xf32>
    %6 = arith.addf %3, %5 : vector<16x128xf32>
    %cst_5 = arith.constant 0.000000e+00 : f32
    %7 = vector.broadcast %cst_5 : f32 to vector<16x128xf32>
    %8 = arith.maximumf %6, %7 : vector<16x128xf32>
    %9 = vector.shape_cast %8 : vector<16x128xf32> to vector<2x8x128xf32>
    %cst_6 = arith.constant dense<0.000000e+00> : vector<2x128xf32>
    %10 = vector.multi_reduction <add>, %9, %cst_6 [1] : vector<2x8x128xf32> to vector<2x128xf32>
    %11 = arith.truncf %10 : vector<2x128xf32> to vector<2x128xbf16>
    %c0_7 = arith.constant 0 : index
    %c0_8 = arith.constant 0 : index
    %12 = vector.load %arg4[%c0_7, %c0_8] : memref<128x128xbf16, #tpu.memory_space<vmem>>, vector<128x128xbf16>
    %cst_9 = arith.constant dense<0.000000e+00> : vector<2x128xf32>
    %13 = tpu.matmul %11, %12, %cst_9 {dimension_numbers = #tpu.dot_dimension_numbers<[1], [0], [0], [1], [0, 0, 1, 1], [], []>} : vector<2x128xbf16>, vector<128x128xbf16>, vector<2x128xf32> -> vector<2x128xf32>
    %c0_10 = arith.constant 0 : index
    %c0_11 = arith.constant 0 : index
    %14 = vector.load %arg5[%c0_10, %c0_11] : memref<1x128xf32, #tpu.memory_space<vmem>>, vector<1x128xf32>
    %15 = vector.broadcast %14 : vector<1x128xf32> to vector<2x128xf32>
    %16 = arith.addf %13, %15 : vector<2x128xf32>
    %cst_12 = arith.constant 0.000000e+00 : f32
    %17 = vector.broadcast %cst_12 : f32 to vector<2x128xf32>
    %18 = arith.maximumf %16, %17 : vector<2x128xf32>
    %19 = arith.truncf %18 : vector<2x128xf32> to vector<2x128xbf16>
    %c0_13 = arith.constant 0 : index
    %c0_14 = arith.constant 0 : index
    %20 = vector.load %arg6[%c0_13, %c0_14] : memref<128x16xbf16, #tpu.memory_space<vmem>>, vector<128x16xbf16>
    %cst_15 = arith.constant dense<0.000000e+00> : vector<2x16xf32>
    %21 = tpu.matmul %19, %20, %cst_15 {dimension_numbers = #tpu.dot_dimension_numbers<[1], [0], [0], [1], [0, 0, 1, 1], [], []>} : vector<2x128xbf16>, vector<128x16xbf16>, vector<2x16xf32> -> vector<2x16xf32>
    %c0_16 = arith.constant 0 : index
    %c0_17 = arith.constant 0 : index
    %22 = vector.load %arg7[%c0_16, %c0_17] : memref<1x16xf32, #tpu.memory_space<vmem>>, vector<1x16xf32>
    %23 = vector.broadcast %22 : vector<1x16xf32> to vector<2x16xf32>
    %24 = arith.addf %21, %23 : vector<2x16xf32>
    %c0_18 = arith.constant 0 : index
    %c0_19 = arith.constant 0 : index
    %25 = vector.load %arg8[%c0_18, %c0_19] : memref<2x16xf32, #tpu.memory_space<vmem>>, vector<2x16xf32>
    tpu.vector_store %arg8[%c0_18, %c0_19], %24 {strides = array<i32>} : memref<2x16xf32, #tpu.memory_space<vmem>>, vector<2x16xf32>,
    return
  }
  func.func @transform_0(%arg0: i32) -> (i32, i32) {
    %c0_i32 = arith.constant 0 : i32
    %c0_i32_0 = arith.constant 0 : i32
    return %arg0, %c0_i32 : i32, i32
  }
  func.func @transform_1(%arg0: i32) -> (i32, i32) {
    %c0_i32 = arith.constant 0 : i32
    %c0_i32_0 = arith.constant 0 : i32
    %c0_i32_1 = arith.constant 0 : i32
    return %c0_i32, %c0_i32_0 : i32, i32
  }
  func.func @transform_2(%arg0: i32) -> (i32, i32) {
    %c0_i32 = arith.constant 0 : i32
    %c0_i32_0 = arith.constant 0 : i32
    %c0_i32_1 = arith.constant 0 : i32
    return %c0_i32, %c0_i32_0 : i32, i32
  }
  func.func @transform_3(%arg0: i32) -> (i32, i32) {
    %c0_i32 = arith.constant 0 : i32
    %c0_i32_0 = arith.constant 0 : i32
    %c0_i32_1 = arith.constant 0 : i32
    return %c0_i32, %c0_i32_0 : i32, i32
  }
  func.func @transform_4(%arg0: i32) -> (i32, i32) {
    %c0_i32 = arith.constant 0 : i32
    %c0_i32_0 = arith.constant 0 : i32
    %c0_i32_1 = arith.constant 0 : i32
    return %c0_i32, %c0_i32_0 : i32, i32
  }
  func.func @transform_5(%arg0: i32) -> (i32, i32) {
    %c0_i32 = arith.constant 0 : i32
    %c0_i32_0 = arith.constant 0 : i32
    %c0_i32_1 = arith.constant 0 : i32
    return %c0_i32, %c0_i32_0 : i32, i32
  }
  func.func @transform_6(%arg0: i32) -> (i32, i32) {
    %c0_i32 = arith.constant 0 : i32
    %c0_i32_0 = arith.constant 0 : i32
    %c0_i32_1 = arith.constant 0 : i32
    return %c0_i32, %c0_i32_0 : i32, i32
  }
  func.func @transform_7(%arg0: i32) -> (i32, i32) {
    %c0_i32 = arith.constant 0 : i32
    %c0_i32_0 = arith.constant 0 : i32
    return %arg0, %c0_i32 : i32, i32
  }
}

</mosaic_0001>

<llo_original>
// kernel: deepset_forward.1
$region0: #{deepset_forward.1}
  #allocation0 [shape = 'u32[]', space=smem, size = 0x4, offset = 0x4, fixed_abs, tag = 'smem constant byte address 0x4 - core index']
  #allocation1 [shape = 'u32[144,128]{1,0:T(1,128)}', space=vmem, size = 0x12000, scoped, tag = 'internal scratch']
  %s0 = inlined_call_operand.vmem [shape: f32[16,32], index: 0, kind: input, shape index: {}]
  %s1 = inlined_call_operand.vmem [shape: bf16[32,128], index: 1, kind: input, shape index: {}]
  %s2 = inlined_call_operand.vmem [shape: f32[1,128], index: 2, kind: input, shape index: {}]
  %s3 = inlined_call_operand.vmem [shape: bf16[128,128], index: 3, kind: input, shape index: {}]
  %s4 = inlined_call_operand.vmem [shape: f32[1,128], index: 4, kind: input, shape index: {}]
  %s5 = inlined_call_operand.vmem [shape: bf16[128,16], index: 5, kind: input, shape index: {}]
  %s6 = inlined_call_operand.vmem [shape: f32[1,16], index: 6, kind: input, shape index: {}]
  %s7 = inlined_call_operand.hbm [shape: f32[2,16], index: 7, kind: output, shape index: {}]
  %s8 = sld [smem:[#allocation0]]
  $region38: #{deepset_forward.1} parent=0
    _
  %s10 = ssub.s32 1, %s8
  %s11 = scalar_select 0, %s10, %s8
  $region1: #{deepset_forward.1} parent=0
    #allocation2 [shape = 'u8[1024]{0}', space=vmem, size = 0x400, scoped, tag = 'output window, operand 0, single buffered']
    #allocation3 [shape = 's32[1]{0}', space=sflag, size = 0x4, scoped, tag = 'scoped memory for deepset_forward.1']
    %12 = vsyncpa [#allocation3], 0
    // Predicated region
    $region2: #{deepset_forward.1} parent=1 // pred_check
      _
    $region3: #{deepset_forward.1} parent=1 // pred_check_branch
      %14 = sbr.rel (0) target = $region5
    $region4: #{deepset_forward.1} parent=1 // pred_region
      _
    $region5: #{deepset_forward.1} parent=1 // pred_fallthru
      _
    // Predicated region
    $region6: #{deepset_forward.1} parent=1 // pred_check
      _
    $region7: #{deepset_forward.1} parent=1 // pred_check_branch
      %16 = sbr.rel (0) target = $region9
    $region8: #{deepset_forward.1} parent=1 // pred_region
      _
    $region9: #{deepset_forward.1} parent=1 // pred_fallthru
      _
    // Predicated region
    $region10: #{deepset_forward.1} parent=1 // pred_check
      _
    $region11: #{deepset_forward.1} parent=1 // pred_check_branch
      %18 = sbr.rel (0) target = $region13
    $region12: #{deepset_forward.1} parent=1 // pred_region
      _
    $region13: #{deepset_forward.1} parent=1 // pred_fallthru
      _
    // Predicated region
    $region14: #{deepset_forward.1} parent=1 // pred_check
      _
    $region15: #{deepset_forward.1} parent=1 // pred_check_branch
      %20 = sbr.rel (0) target = $region17
    $region16: #{deepset_forward.1} parent=1 // pred_region
      _
    $region17: #{deepset_forward.1} parent=1 // pred_fallthru
      _
    // Predicated region
    $region18: #{deepset_forward.1} parent=1 // pred_check
      _
    $region19: #{deepset_forward.1} parent=1 // pred_check_branch
      %22 = sbr.rel (0) target = $region21
    $region20: #{deepset_forward.1} parent=1 // pred_region
      _
    $region21: #{deepset_forward.1} parent=1 // pred_fallthru
      _
    // Predicated region
    $region22: #{deepset_forward.1} parent=1 // pred_check
      _
    $region23: #{deepset_forward.1} parent=1 // pred_check_branch
      %24 = sbr.rel (0) target = $region25
    $region24: #{deepset_forward.1} parent=1 // pred_region
      _
    $region25: #{deepset_forward.1} parent=1 // pred_fallthru
      _
    // Predicated region
    $region26: #{deepset_forward.1} parent=1 // pred_check
      _
    $region27: #{deepset_forward.1} parent=1 // pred_check_branch
      %26 = sbr.rel (0) target = $region29
    $region28: #{deepset_forward.1} parent=1 // pred_region
      _
    $region29: #{deepset_forward.1} parent=1 // pred_fallthru
      _
    %v28 = vld [vmem:[%s0] sm:$0xff]
    %v29 = vld [vmem:[%s0 + $0x8] sm:$0xff]
    %v30 = vpack.c.bf16 %v29, %v28
    %v31 = vld [vmem:[%s1] sm:$0xf]
    %v32 = vld [vmem:[%s1 + $0x4] sm:$0xf]
    %v33 = vld [vmem:[%s1 + $0x8] sm:$0xf]
    %v34 = vld [vmem:[%s1 + $0xc] sm:$0xf]
    %v35 = vld [vmem:[%s2] sm:$0x1]
    %v37 = vlaneseq
    %v38 = vshrl.u32 %v37, 7
    %v39 = vsub.s32 0, %v38
    %v40 = vrot.slane %v35, %v39
    %v46 = vunpack.c.l.b16 %v31
    %v47 = vunpack.c.l.b16 %v32
    %v48 = vunpack.c.l.b16 %v33
    %v49 = vunpack.c.l.b16 %v34
    %v50 = vpack.c.b16 %v47, %v46
    %v51 = vpack.c.b16 %v49, %v48
    %vm54 = vcmask 261120
    %v56 = vsel %vm54, %v30, 0
    %58 = vmatprep.subr.bf16.mxu0 0
    %59 = vmatpush1.bf16.msra.mxu0 0
    %60 = vmatprep.subr.bf16.mxu0 0
    %61 = vmatpush1.bf16.msra.mxu0 0
    %62 = vmatprep.subr.bf16.mxu0 0
    %63 = vmatpush1.bf16.msra.mxu0 0
    %64 = vmatprep.subr.bf16.mxu0 0
    %65 = vmatpush1.bf16.msra.mxu0 0
    %66 = vmatprep.subr.bf16.mxu0 0
    %67 = vmatpush1.bf16.msra.mxu0 0
    %68 = vmatprep.subr.bf16.mxu0 0
    %69 = vmatpush1.bf16.msra.mxu0 0
    %70 = vmatprep.subr.bf16.mxu0 0
    %71 = vmatpush1.bf16.msra.mxu0 %v51
    %72 = vmatprep.subr.bf16.mxu0 0
    %73 = vmatpush1.bf16.msra.mxu0 %v50
    %74 = vmatprep.subr.bf16.mxu0 0
    %75 = vmatpush2.bf16.msra.mxu0 0
    %76 = vmatprep.subr.bf16.mxu0 0
    %77 = vmatpush2.bf16.msra.mxu0 0
    %78 = vmatprep.subr.bf16.mxu0 0
    %79 = vmatpush2.bf16.msra.mxu0 0
    %80 = vmatprep.subr.bf16.mxu0 0
    %81 = vmatpush2.bf16.msra.mxu0 0
    %82 = vmatprep.subr.bf16.mxu0 0
    %83 = vmatpush2.bf16.msra.mxu0 0
    %84 = vmatprep.subr.bf16.mxu0 0
    %85 = vmatpush2.bf16.msra.mxu0 0
    %86 = vmatprep.subr.bf16.mxu0 0
    %87 = vmatpush2.bf16.msra.mxu0 0
    %88 = vmatprep.subr.bf16.mxu0 0
    %89 = vmatpush2.bf16.msra.mxu0 0
    %90 = vmatprep.mubr.bf16.mxu0 0
    %91 = vmatmul.mubr.bf16.gmra.mxu0 %v56
    %v92 = vpop.f32.mrf.mxu0
    %v93 = vadd.f32 %v40, %v92
    %v94 = vpop.f32.mrf.mxu0
    %v95 = vpop.f32.mrf.mxu0
    %v96 = vadd.f32 %v40, %v95
    %v97 = vpop.f32.mrf.mxu0
    %98 = vdwg.mxu0
    %v99 = vmax.f32 %v93, 0.0
    %v100 = vmax.f32 %v96, 0.0
    %v101 = vrot.slane %v99, 4
    %v102 = vadd.f32 %v99, %v101
    %v103 = vrot.slane %v102, 2
    %v104 = vadd.f32 %v102, %v103
    %v105 = vrot.slane %v104, 1
    %v106 = vadd.f32 %v104, %v105
    %v107 = vrot.slane %v100, 4
    %v108 = vadd.f32 %v100, %v107
    %v109 = vrot.slane %v108, 2
    %v110 = vadd.f32 %v108, %v109
    %v111 = vrot.slane %v110, 1
    %v112 = vadd.f32 %v110, %v111
    %v113 = vpack.c.bf16 %v106, %v106
    %v114 = vpack.c.bf16 %v112, %v112
    %v115 = vld [vmem:[%s3] sm:$0xf]
    %v116 = vld [vmem:[%s3 + $0x4] sm:$0xf]
    %v117 = vld [vmem:[%s3 + $0x8] sm:$0xf]
    %v118 = vld [vmem:[%s3 + $0xc] sm:$0xf]
    %v119 = vld [vmem:[%s3 + $0x10] sm:$0xf]
    %v120 = vld [vmem:[%s3 + $0x14] sm:$0xf]
    %v121 = vld [vmem:[%s3 + $0x18] sm:$0xf]
    %v122 = vld [vmem:[%s3 + $0x1c] sm:$0xf]
    %v123 = vld [vmem:[%s3 + $0x20] sm:$0xf]
    %v124 = vld [vmem:[%s3 + $0x24] sm:$0xf]
    %v125 = vld [vmem:[%s3 + $0x28] sm:$0xf]
    %v126 = vld [vmem:[%s3 + $0x2c] sm:$0xf]
    %v127 = vld [vmem:[%s3 + $0x30] sm:$0xf]
    %v128 = vld [vmem:[%s3 + $0x34] sm:$0xf]
    %v129 = vld [vmem:[%s3 + $0x38] sm:$0xf]
    %v130 = vld [vmem:[%s3 + $0x3c] sm:$0xf]
    %v131 = vld [vmem:[%s4] sm:$0x1]
    %v133 = vlaneseq
    %v134 = vshrl.u32 %v133, 7
    %v135 = vsub.s32 0, %v134
    %v136 = vrot.slane %v131, %v135
    %v140 = vunpack.c.l.b16 %v113
    %v141 = vunpack.c.l.b16 %v114
    %vm142 = vcmask 1041409
    %v143 = vsel %vm142, %v141, %v140
    %v144 = vpack.c.b16 %v143, %v143
    %v162 = vunpack.c.l.b16 %v115
    %v163 = vunpack.c.l.b16 %v116
    %v164 = vunpack.c.l.b16 %v117
    %v165 = vunpack.c.l.b16 %v118
    %v166 = vunpack.c.l.b16 %v119
    %v167 = vunpack.c.l.b16 %v120
    %v168 = vunpack.c.l.b16 %v121
    %v169 = vunpack.c.l.b16 %v122
    %v170 = vunpack.c.l.b16 %v123
    %v171 = vunpack.c.l.b16 %v124
    %v172 = vunpack.c.l.b16 %v125
    %v173 = vunpack.c.l.b16 %v126
    %v174 = vunpack.c.l.b16 %v127
    %v175 = vunpack.c.l.b16 %v128
    %v176 = vunpack.c.l.b16 %v129
    %v177 = vunpack.c.l.b16 %v130
    %v178 = vpack.c.b16 %v163, %v162
    %v179 = vpack.c.b16 %v165, %v164
    %v180 = vpack.c.b16 %v167, %v166
    %v181 = vpack.c.b16 %v169, %v168
    %v182 = vpack.c.b16 %v171, %v170
    %v183 = vpack.c.b16 %v173, %v172
    %v184 = vpack.c.b16 %v175, %v174
    %v185 = vpack.c.b16 %v177, %v176
    %194 = vmatprep.subr.bf16.mxu0 0
    %195 = vmatpush1.bf16.msra.mxu0 %v185
    %196 = vmatprep.subr.bf16.mxu0 0
    %197 = vmatpush1.bf16.msra.mxu0 %v184
    %198 = vmatprep.subr.bf16.mxu0 0
    %199 = vmatpush1.bf16.msra.mxu0 %v183
    %200 = vmatprep.subr.bf16.mxu0 0
    %201 = vmatpush1.bf16.msra.mxu0 %v182
    %202 = vmatprep.subr.bf16.mxu0 0
    %203 = vmatpush1.bf16.msra.mxu0 %v181
    %204 = vmatprep.subr.bf16.mxu0 0
    %205 = vmatpush1.bf16.msra.mxu0 %v180
    %206 = vmatprep.subr.bf16.mxu0 0
    %207 = vmatpush1.bf16.msra.mxu0 %v179
    %208 = vmatprep.subr.bf16.mxu0 0
    %209 = vmatpush1.bf16.msra.mxu0 %v178
    %210 = vmatprep.subr.bf16.mxu0 0
    %211 = vmatpush2.bf16.msra.mxu0 0
    %212 = vmatprep.subr.bf16.mxu0 0
    %213 = vmatpush2.bf16.msra.mxu0 0
    %214 = vmatprep.subr.bf16.mxu0 0
    %215 = vmatpush2.bf16.msra.mxu0 0
    %216 = vmatprep.subr.bf16.mxu0 0
    %217 = vmatpush2.bf16.msra.mxu0 0
    %218 = vmatprep.subr.bf16.mxu0 0
    %219 = vmatpush2.bf16.msra.mxu0 0
    %220 = vmatprep.subr.bf16.mxu0 0
    %221 = vmatpush2.bf16.msra.mxu0 0
    %222 = vmatprep.subr.bf16.mxu0 0
    %223 = vmatpush2.bf16.msra.mxu0 0
    %224 = vmatprep.subr.bf16.mxu0 0
    %225 = vmatpush2.bf16.msra.mxu0 0
    %226 = vmatprep.mubr.bf16.mxu0 0
    %227 = vmatmul.mubr.bf16.gmra.mxu0 %v144
    %v228 = vpop.f32.mrf.mxu0
    %v229 = vadd.f32 %v136, %v228
    %v230 = vpop.f32.mrf.mxu0
    %v231 = vpop.f32.mrf.mxu0
    %v232 = vpop.f32.mrf.mxu0
    %233 = vdwg.mxu0
    %v234 = vmax.f32 %v229, 0.0
    %v235 = vpack.c.bf16 %v234, %v234
    %v236 = vld [vmem:[%s5] sm:$0xf]
    %v237 = vld [vmem:[%s5 + $0x4] sm:$0xf]
    %v238 = vld [vmem:[%s5 + $0x8] sm:$0xf]
    %v239 = vld [vmem:[%s5 + $0xc] sm:$0xf]
    %v240 = vld [vmem:[%s5 + $0x10] sm:$0xf]
    %v241 = vld [vmem:[%s5 + $0x14] sm:$0xf]
    %v242 = vld [vmem:[%s5 + $0x18] sm:$0xf]
    %v243 = vld [vmem:[%s5 + $0x1c] sm:$0xf]
    %v244 = vld [vmem:[%s5 + $0x20] sm:$0xf]
    %v245 = vld [vmem:[%s5 + $0x24] sm:$0xf]
    %v246 = vld [vmem:[%s5 + $0x28] sm:$0xf]
    %v247 = vld [vmem:[%s5 + $0x2c] sm:$0xf]
    %v248 = vld [vmem:[%s5 + $0x30] sm:$0xf]
    %v249 = vld [vmem:[%s5 + $0x34] sm:$0xf]
    %v250 = vld [vmem:[%s5 + $0x38] sm:$0xf]
    %v251 = vld [vmem:[%s5 + $0x3c] sm:$0xf]
    %v252 = vld [vmem:[%s6] sm:$0x1]
    %v254 = vlaneseq
    %v255 = vshrl.u32 %v254, 7
    %v256 = vsub.s32 0, %v255
    %v257 = vrot.slane %v252, %v256
    %v275 = vunpack.c.l.b16 %v236
    %v276 = vunpack.c.l.b16 %v237
    %v277 = vunpack.c.l.b16 %v238
    %v278 = vunpack.c.l.b16 %v239
    %v279 = vunpack.c.l.b16 %v240
    %v280 = vunpack.c.l.b16 %v241
    %v281 = vunpack.c.l.b16 %v242
    %v282 = vunpack.c.l.b16 %v243
    %v283 = vunpack.c.l.b16 %v244
    %v284 = vunpack.c.l.b16 %v245
    %v285 = vunpack.c.l.b16 %v246
    %v286 = vunpack.c.l.b16 %v247
    %v287 = vunpack.c.l.b16 %v248
    %v288 = vunpack.c.l.b16 %v249
    %v289 = vunpack.c.l.b16 %v250
    %v290 = vunpack.c.l.b16 %v251
    %v291 = vpack.c.b16 %v276, %v275
    %v292 = vpack.c.b16 %v278, %v277
    %v293 = vpack.c.b16 %v280, %v279
    %v294 = vpack.c.b16 %v282, %v281
    %v295 = vpack.c.b16 %v284, %v283
    %v296 = vpack.c.b16 %v286, %v285
    %v297 = vpack.c.b16 %v288, %v287
    %v298 = vpack.c.b16 %v290, %v289
    %307 = vmatprep.subr.bf16.mxu0 0
    %308 = vmatpush1.bf16.msra.mxu0 %v298
    %309 = vmatprep.subr.bf16.mxu0 0
    %310 = vmatpush1.bf16.msra.mxu0 %v297
    %311 = vmatprep.subr.bf16.mxu0 0
    %312 = vmatpush1.bf16.msra.mxu0 %v296
    %313 = vmatprep.subr.bf16.mxu0 0
    %314 = vmatpush1.bf16.msra.mxu0 %v295
    %315 = vmatprep.subr.bf16.mxu0 0
    %316 = vmatpush1.bf16.msra.mxu0 %v294
    %317 = vmatprep.subr.bf16.mxu0 0
    %318 = vmatpush1.bf16.msra.mxu0 %v293
    %319 = vmatprep.subr.bf16.mxu0 0
    %320 = vmatpush1.bf16.msra.mxu0 %v292
    %321 = vmatprep.subr.bf16.mxu0 0
    %322 = vmatpush1.bf16.msra.mxu0 %v291
    %323 = vmatprep.subr.bf16.mxu0 0
    %324 = vmatpush2.bf16.msra.mxu0 0
    %325 = vmatprep.subr.bf16.mxu0 0
    %326 = vmatpush2.bf16.msra.mxu0 0
    %327 = vmatprep.subr.bf16.mxu0 0
    %328 = vmatpush2.bf16.msra.mxu0 0
    %329 = vmatprep.subr.bf16.mxu0 0
    %330 = vmatpush2.bf16.msra.mxu0 0
    %331 = vmatprep.subr.bf16.mxu0 0
    %332 = vmatpush2.bf16.msra.mxu0 0
    %333 = vmatprep.subr.bf16.mxu0 0
    %334 = vmatpush2.bf16.msra.mxu0 0
    %335 = vmatprep.subr.bf16.mxu0 0
    %336 = vmatpush2.bf16.msra.mxu0 0
    %337 = vmatprep.subr.bf16.mxu0 0
    %338 = vmatpush2.bf16.msra.mxu0 0
    %339 = vmatprep.mubr.bf16.mxu0 0
    %340 = vmatmul.mubr.bf16.gmra.mxu0 %v235
    %v341 = vpop.f32.mrf.mxu0
    %v342 = vadd.f32 %v257, %v341
    %v343 = vpop.f32.mrf.mxu0
    %v344 = vpop.f32.mrf.mxu0
    %v345 = vpop.f32.mrf.mxu0
    %346 = vdwg.mxu0
    %vm347 = vcmask 123904
    %348 = vst.msk [vmem:[#allocation2] sm:$0x3] %vm347, %v342
    // Predicated region
    $region30: #{deepset_forward.1} parent=1 // pred_check
      _
    $region31: #{deepset_forward.1} parent=1 // pred_check_branch
      %350 = sbr.rel (0) target = $region33
    $region32: #{deepset_forward.1} parent=1 // pred_region
      %s352 = ssub.s32 32, 32
      %353 = vsyncadd [#allocation3], %s352
      %s355 = sshll.u32 [#allocation2], 4
      %s356 = int_to_ptr.vmem [resolvable:$true] %s355
      %358 = dma.vmem_to_hbm [thread:$0]  %s356, 32, %s7, [#allocation3]
    $region33: #{deepset_forward.1} parent=1 // pred_fallthru
      _
    // Predicated region
    $region34: #{deepset_forward.1} parent=1 // pred_check
      _
    $region35: #{deepset_forward.1} parent=1 // pred_check_branch
      %360 = sbr.rel (0) target = $region37
    $region36: #{deepset_forward.1} parent=1 // pred_region
      %361 = dma.done [#allocation3], 32
    $region37: #{deepset_forward.1} parent=1 // pred_fallthru
      _
    %362 = vsyncpa [#allocation3], 1

</llo_original>
